<compile_context>
chip_gen: v7x
topology: tpu7x:2x2x1
jax: 0.10.0
libtpu: 0.0.40
codegen_flags: <defaults>
</compile_context>

<pallas_src>
import jax
import jax.numpy as jnp
from jax.experimental import pallas as pl
from jax.experimental.pallas import tpu as pltpu


def _mscam_local_kernel(x_ref, w1_ref, b1_ref, w2_ref, g_ref, o_ref):
    """Per (image, spatial-tile) body.

    x_ref : (1, C, T)  input tile  (channels on sublanes, pixels on lanes)
    w1_ref: (Ci, C)    conv1 weight with BN1 scale folded in
    b1_ref: (Ci, 1)    folded conv1 + BN1 bias
    w2_ref: (C, Ci)    conv2 weight with BN2 scale folded in
    g_ref : (1, C, 1)  precomputed (global-branch output + folded BN2 bias)
    o_ref : (1, C, T)  gated output tile
    """
    x = x_ref[0]                                                    # (C, T)

    # local branch: two 1x1 convs == channel matmuls on the MXU (f32 accumulate)
    h = jnp.dot(w1_ref[...], x.astype(w1_ref.dtype),
                preferred_element_type=jnp.float32)                 # (Ci, T)
    h = jnp.maximum(h + b1_ref[...], 0.0)                           # BN1 bias + ReLU
    xl = jnp.dot(w2_ref[...], h.astype(w2_ref.dtype),
                 preferred_element_type=jnp.float32)                # (C, T)

    # gate: sigmoid(local + global + BN2 bias); (C,1) broadcasts over the lanes.
    # exp lives on the EUP slot, so it is free filler under the HBM roofline.
    wei = jax.nn.sigmoid(xl + g_ref[0])
    o_ref[0] = (x.astype(jnp.float32) * wei).astype(o_ref.dtype)


def _fold_bn(conv_b, gamma, beta, mean, var, eps=1e-5):
    """Fold conv bias + eval-mode BatchNorm into per-channel (scale, bias)."""
    scale = gamma / jnp.sqrt(var + eps)
    bias = (conv_b - mean) * scale + beta
    return scale, bias


def _choose_tile(C, Ci, HW, bytes_per_elem):
    """Spatial tile width T (lanes).

    T is a multiple of 128 (lane-dense, unmasked stores), sized so the
    double-buffered input + output tiles plus resident weights/gate fit a
    conservative 16 MiB budget (safe on v5e/v6e/v7x), and capped at 8192 so a
    tile's HBM time comfortably hides the ~0.35 us per-step pipeline overhead.
    """
    if HW <= 128:
        return HW                                   # full-extent last dim is allowed
    budget = 16 * 1024 * 1024
    # resident (not T-dependent): weights + bias + gate, double-buffered worst case
    resident = 2 * (Ci * C + C * Ci) * bytes_per_elem + 2 * (Ci + C) * 4
    per_lane = 2 * 2 * C * bytes_per_elem           # (in + out) x 2 pipeline buffers
    max_t = max(128, ((budget - resident) // per_lane) // 128 * 128)
    hw_pad = ((HW + 127) // 128) * 128
    return int(min(hw_pad, max_t, 8192))


@jax.jit
def mscam_forward(x_nchw, params):
    N, C, H, W = x_nchw.shape
    HW = H * W
    dt = x_nchw.dtype
    Ci = params["w1"].shape[0]                      # inter_channels

    # ---- fold eval-mode BN into weights / biases (tiny tensors, plain XLA) ----
    s1, b1 = _fold_bn(params["b1"], params["bn1_gamma"], params["bn1_beta"],
                      params["bn1_mean"], params["bn1_var"])
    s2, b2 = _fold_bn(params["b2"], params["bn2_gamma"], params["bn2_beta"],
                      params["bn2_mean"], params["bn2_var"])
    sg1, bg1 = _fold_bn(params["bg1"], params["bng1_gamma"], params["bng1_beta"],
                        params["bng1_mean"], params["bng1_var"])
    sg2, bg2 = _fold_bn(params["bg2"], params["bng2_gamma"], params["bng2_beta"],
                        params["bng2_mean"], params["bng2_var"])

    w1 = params["w1"][:, :, 0, 0] * s1[:, None]     # (Ci, C)  BN1 scale folded
    w2 = params["w2"][:, :, 0, 0] * s2[:, None]     # (C, Ci)  BN2 scale folded
    wg1 = params["wg1"][:, :, 0, 0] * sg1[:, None]
    wg2 = params["wg2"][:, :, 0, 0] * sg2[:, None]

    # ---- global branch prepass (N tiny matmuls; keep out of the hot kernel) ----
    x3 = x_nchw.reshape(N, C, HW)
    xm = jnp.mean(x3.astype(jnp.float32), axis=-1)                  # (N, C)
    hg = jnp.maximum(xm @ wg1.T + bg1[None, :], 0.0)                # (N, Ci)
    xg = hg @ wg2.T + bg2[None, :]                                  # (N, C)
    g = (xg + b2[None, :]).reshape(N, C, 1).astype(jnp.float32)     # + local BN2 bias

    # kernel operands (weights in the activation dtype -> bf16 MXU path if bf16 x)
    w1k = w1.astype(dt)
    w2k = w2.astype(dt)
    b1k = b1.reshape(Ci, 1).astype(jnp.float32)

    T = _choose_tile(C, Ci, HW, jnp.dtype(dt).itemsize)
    grid = (N, pl.cdiv(HW, T))

    out = pl.pallas_call(
        _mscam_local_kernel,
        out_shape=jax.ShapeDtypeStruct((N, C, HW), dt),
        grid=grid,
        in_specs=[
            pl.BlockSpec((1, C, T), lambda n, t: (n, 0, t)),        # x tile
            pl.BlockSpec((Ci, C), lambda n, t: (0, 0)),             # folded conv1 W
            pl.BlockSpec((Ci, 1), lambda n, t: (0, 0)),             # folded conv1 bias
            pl.BlockSpec((C, Ci), lambda n, t: (0, 0)),             # folded conv2 W
            pl.BlockSpec((1, C, 1), lambda n, t: (n, 0, 0)),        # global + BN2 bias
        ],
        out_specs=pl.BlockSpec((1, C, T), lambda n, t: (n, 0, t)),
        compiler_params=pltpu.CompilerParams(
            dimension_semantics=("parallel", "parallel"),
            vmem_limit_bytes=32 * 1024 * 1024,
        ),
        # TODO(synk): pass input_output_aliases={0: 0} when the caller can donate x.
    )(x3, w1k, b1k, w2k, g)

    return out.reshape(N, C, H, W)


def mscam_reference(x, params):
    """Pure-JAX NCHW reference (eval-mode BN) for validation."""
    xf = x.astype(jnp.float32)

    def conv_bn(h, wname, bname, pfx):
        w = params[wname][:, :, 0, 0]                               # (out, in)
        y = jnp.einsum("nchw,oc->nohw", h, w) + params[bname][None, :, None, None]
        s, b = _fold_bn(jnp.zeros_like(params[bname]),
                        params[pfx + "_gamma"], params[pfx + "_beta"],
                        params[pfx + "_mean"], params[pfx + "_var"])
        return y * s[None, :, None, None] + b[None, :, None, None]

    xl = conv_bn(xf, "w1", "b1", "bn1")
    xl = jnp.maximum(xl, 0.0)
    xl = conv_bn(xl, "w2", "b2", "bn2")

    xm = jnp.mean(xf, axis=(2, 3), keepdims=True)
    xg = conv_bn(xm, "wg1", "bg1", "bng1")
    xg = jnp.maximum(xg, 0.0)
    xg = conv_bn(xg, "wg2", "bg2", "bng2")

    wei = jax.nn.sigmoid(xl + xg)
    return xf * wei


def make_params(key, channels, r):
    ci = channels // r
    ks = jax.random.split(key, 8)
    p = {
        "w1": 0.1 * jax.random.normal(ks[0], (ci, channels, 1, 1), jnp.float32),
        "b1": 0.05 * jax.random.normal(ks[1], (ci,), jnp.float32),
        "w2": 0.1 * jax.random.normal(ks[2], (channels, ci, 1, 1), jnp.float32),
        "b2": 0.05 * jax.random.normal(ks[3], (channels,), jnp.float32),
        "wg1": 0.1 * jax.random.normal(ks[4], (ci, channels, 1, 1), jnp.float32),
        "bg1": 0.05 * jax.random.normal(ks[5], (ci,), jnp.float32),
        "wg2": 0.1 * jax.random.normal(ks[6], (channels, ci, 1, 1), jnp.float32),
        "bg2": 0.05 * jax.random.normal(ks[7], (channels,), jnp.float32),
    }
    # deterministic, non-trivial eval-mode BatchNorm statistics
    def bn(prefix, n, off):
        p[prefix + "_gamma"] = 1.0 + 0.01 * jnp.arange(n, dtype=jnp.float32)
        p[prefix + "_beta"] = 0.02 * jnp.arange(n, dtype=jnp.float32) - 0.1
        p[prefix + "_mean"] = 0.01 * (jnp.arange(n, dtype=jnp.float32) - off)
        p[prefix + "_var"] = 1.0 + 0.05 * jnp.arange(n, dtype=jnp.float32)
    bn("bn1", ci, 1.0)
    bn("bn2", channels, 2.0)
    bn("bng1", ci, 3.0)
    bn("bng2", channels, 4.0)
    return p


if __name__ == "__main__":
    channels, r = 64, 4          # module defaults
    N, H, W = 2, 16, 16          # HW = 256 -> lane-dense tiles

    key = jax.random.PRNGKey(0)
    kx, kp = jax.random.split(key)
    x = jax.random.normal(kx, (N, channels, H, W), jnp.float32)
    params = make_params(kp, channels, r)

    out = mscam_forward(x, params)
    out = jax.block_until_ready(out)

    ref = mscam_reference(x, params)
    assert out.shape == (N, channels, H, W)
    assert jnp.allclose(out, ref, rtol=2e-5, atol=2e-5), (
        float(jnp.max(jnp.abs(out - ref))))

    print("KERNEL_OK")
</pallas_src>

<mosaic_0001>
module attributes {stable_mosaic.version = 11 : i64} {
  func.func @_mscam_local_kernel(%arg0: i32, %arg1: i32, %arg2: memref<1x64x256xf32, #tpu.memory_space<vmem>>, %arg3: memref<16x64xf32, #tpu.memory_space<vmem>>, %arg4: memref<16x1xf32, #tpu.memory_space<vmem>>, %arg5: memref<64x16xf32, #tpu.memory_space<vmem>>, %arg6: memref<1x64x1xf32, #tpu.memory_space<vmem>>, %arg7: memref<1x64x256xf32, #tpu.memory_space<vmem>>) attributes {dimension_semantics = [#tpu.dimension_semantics<parallel>, #tpu.dimension_semantics<parallel>], iteration_bounds = array<i64: 2, 1>, scalar_prefetch = 0 : i64, scratch_operands = 0 : i64, tpu.core_type = #tpu.core_type<tc>, window_params = [{transform_indices = @transform_0, window_bounds = array<i64: 1, 64, 256>}, {pipeline_mode = #tpu.pipeline_mode<synchronous>, transform_indices = @transform_1, window_bounds = array<i64: 16, 64>}, {pipeline_mode = #tpu.pipeline_mode<synchronous>, transform_indices = @transform_2, window_bounds = array<i64: 16, 1>}, {pipeline_mode = #tpu.pipeline_mode<synchronous>, transform_indices = @transform_3, window_bounds = array<i64: 64, 16>}, {transform_indices = @transform_4, window_bounds = array<i64: 1, 64, 1>}, {transform_indices = @transform_5, window_bounds = array<i64: 1, 64, 256>}]} {
    %c0 = arith.constant 0 : index
    %c0_0 = arith.constant 0 : index
    %c0_1 = arith.constant 0 : index
    %0 = vector.load %arg2[%c0, %c0_0, %c0_1] : memref<1x64x256xf32, #tpu.memory_space<vmem>>, vector<1x64x256xf32>
    %1 = vector.shape_cast %0 : vector<1x64x256xf32> to vector<64x256xf32>
    %c0_2 = arith.constant 0 : index
    %c0_3 = arith.constant 0 : index
    %2 = vector.load %arg3[%c0_2, %c0_3] : memref<16x64xf32, #tpu.memory_space<vmem>>, vector<16x64xf32>
    %cst = arith.constant dense<0.000000e+00> : vector<16x256xf32>
    %3 = tpu.matmul %2, %1, %cst {dimension_numbers = #tpu.dot_dimension_numbers<[1], [0], [0], [1], [0, 0, 1, 1], [], []>} : vector<16x64xf32>, vector<64x256xf32>, vector<16x256xf32> -> vector<16x256xf32>
    %c0_4 = arith.constant 0 : index
    %c0_5 = arith.constant 0 : index
    %4 = vector.load %arg4[%c0_4, %c0_5] : memref<16x1xf32, #tpu.memory_space<vmem>>, vector<16x1xf32>
    %5 = vector.broadcast %4 : vector<16x1xf32> to vector<16x256xf32>
    %6 = arith.addf %3, %5 : vector<16x256xf32>
    %cst_6 = arith.constant 0.000000e+00 : f32
    %7 = vector.broadcast %cst_6 : f32 to vector<16x256xf32>
    %8 = arith.maximumf %6, %7 : vector<16x256xf32>
    %c0_7 = arith.constant 0 : index
    %c0_8 = arith.constant 0 : index
    %9 = vector.load %arg5[%c0_7, %c0_8] : memref<64x16xf32, #tpu.memory_space<vmem>>, vector<64x16xf32>
    %cst_9 = arith.constant dense<0.000000e+00> : vector<64x256xf32>
    %10 = tpu.matmul %9, %8, %cst_9 {dimension_numbers = #tpu.dot_dimension_numbers<[1], [0], [0], [1], [0, 0, 1, 1], [], []>} : vector<64x16xf32>, vector<16x256xf32>, vector<64x256xf32> -> vector<64x256xf32>
    %c0_10 = arith.constant 0 : index
    %c0_11 = arith.constant 0 : index
    %c0_12 = arith.constant 0 : index
    %11 = vector.load %arg6[%c0_10, %c0_11, %c0_12] : memref<1x64x1xf32, #tpu.memory_space<vmem>>, vector<1x64x1xf32>
    %12 = vector.shape_cast %11 : vector<1x64x1xf32> to vector<64x1xf32>
    %13 = vector.broadcast %12 : vector<64x1xf32> to vector<64x256xf32>
    %14 = arith.addf %10, %13 : vector<64x256xf32>
    %15 = arith.negf %14 : vector<64x256xf32>
    %16 = math.exp %15 : vector<64x256xf32>
    %cst_13 = arith.constant 1.000000e+00 : f32
    %17 = vector.broadcast %cst_13 : f32 to vector<64x256xf32>
    %18 = arith.addf %17, %16 : vector<64x256xf32>
    %19 = arith.divf %17, %18 : vector<64x256xf32>
    %20 = arith.mulf %1, %19 : vector<64x256xf32>
    %c0_14 = arith.constant 0 : index
    %c0_15 = arith.constant 0 : index
    %c0_16 = arith.constant 0 : index
    %21 = vector.load %arg7[%c0_14, %c0_15, %c0_16] : memref<1x64x256xf32, #tpu.memory_space<vmem>>, vector<1x64x256xf32>
    %22 = vector.shape_cast %21 : vector<1x64x256xf32> to vector<64x256xf32>
    %23 = vector.shape_cast %20 : vector<64x256xf32> to vector<1x64x256xf32>
    tpu.vector_store %arg7[%c0_14, %c0_15, %c0_16], %23 {strides = array<i32>} : memref<1x64x256xf32, #tpu.memory_space<vmem>>, vector<1x64x256xf32>,
    return
  }
  func.func @transform_0(%arg0: i32, %arg1: i32) -> (i32, i32, i32) {
    %c0_i32 = arith.constant 0 : i32
    %c0_i32_0 = arith.constant 0 : i32
    return %arg0, %c0_i32, %arg1 : i32, i32, i32
  }
  func.func @transform_1(%arg0: i32, %arg1: i32) -> (i32, i32) {
    %c0_i32 = arith.constant 0 : i32
    %c0_i32_0 = arith.constant 0 : i32
    %c0_i32_1 = arith.constant 0 : i32
    return %c0_i32, %c0_i32_0 : i32, i32
  }
  func.func @transform_2(%arg0: i32, %arg1: i32) -> (i32, i32) {
    %c0_i32 = arith.constant 0 : i32
    %c0_i32_0 = arith.constant 0 : i32
    %c0_i32_1 = arith.constant 0 : i32
    return %c0_i32, %c0_i32_0 : i32, i32
  }
  func.func @transform_3(%arg0: i32, %arg1: i32) -> (i32, i32) {
    %c0_i32 = arith.constant 0 : i32
    %c0_i32_0 = arith.constant 0 : i32
    %c0_i32_1 = arith.constant 0 : i32
    return %c0_i32, %c0_i32_0 : i32, i32
  }
  func.func @transform_4(%arg0: i32, %arg1: i32) -> (i32, i32, i32) {
    %c0_i32 = arith.constant 0 : i32
    %c0_i32_0 = arith.constant 0 : i32
    %c0_i32_1 = arith.constant 0 : i32
    return %arg0, %c0_i32, %c0_i32_0 : i32, i32, i32
  }
  func.func @transform_5(%arg0: i32, %arg1: i32) -> (i32, i32, i32) {
    %c0_i32 = arith.constant 0 : i32
    %c0_i32_0 = arith.constant 0 : i32
    return %arg0, %c0_i32, %arg1 : i32, i32, i32
  }
}

</mosaic_0001>

<llo_original>
// kernel: mscam_forward.1
$region0: #{mscam_forward.1}
  #allocation0 [shape = 'u32[]', space=smem, size = 0x4, offset = 0x4, fixed_abs, tag = 'smem constant byte address 0x4 - core index']
  #allocation1 [shape = 'u32[144,128]{1,0:T(1,128)}', space=vmem, size = 0x12000, scoped, tag = 'internal scratch']
  %s0 = inlined_call_operand.vmem [shape: f32[2,64,256], index: 0, kind: input, shape index: {}]
  %s1 = inlined_call_operand.vmem [shape: f32[16,64], index: 1, kind: input, shape index: {}]
  %s2 = inlined_call_operand.vmem [shape: f32[16,1], index: 2, kind: input, shape index: {}]
  %s3 = inlined_call_operand.vmem [shape: f32[64,16], index: 3, kind: input, shape index: {}]
  %s4 = inlined_call_operand.vmem [shape: f32[2,64,1], index: 4, kind: input, shape index: {}]
  %s5 = inlined_call_operand.vmem [shape: f32[2,64,256], index: 5, kind: output, shape index: {}]
  %s6 = sld [smem:[#allocation0]]
  $region53: #{mscam_forward.1} parent=0
    _
  %s8 = ssub.s32 1, %s6
  %s9 = scalar_select 0, %s8, %s6
  loop: start=0, step=1, limit=4
  $region2: #{mscam_forward.1} parent=0 // loop_pre_header
    _
  $region3: #{mscam_forward.1} parent=0 // loop_header
    %s11 = sphi 0, %s15
    %p12 = scmp.ge.s32.totalorder %s11, 4
    %s18 = sphi 0, %s30
    %s19 = sphi 0, %s26
    %s20 = sphi 0, %s18
    %s21 = sphi 0, %s19
    %s22 = sphi 0, %s20
    %s23 = sphi 0, %s21
    %s35 = sphi 0, %s37
    %s38 = sphi 0, %s35
    %s39 = sphi 0, %s38
    %s55 = sphi 0, %s39
    %s59 = sphi 0, %s59
    %s61 = sphi 0, %s59
    %s62 = sphi 0, %s61
    %s76 = sphi 0, %s62
    %s80 = sphi 0, %s80
    %s82 = sphi 0, %s80
    %s83 = sphi 0, %s82
    %s97 = sphi 0, %s83
    %s101 = sphi 0, %s101
    %s103 = sphi 0, %s101
    %s104 = sphi 0, %s103
    %s118 = sphi 0, %s104
    %s124 = sphi 0, %s126
    %s127 = sphi 0, %s124
    %s128 = sphi 0, %s127
    %s144 = sphi 0, %s128
    %s152 = sphi 0, %s154
    %s155 = sphi 0, %s152
    %s156 = sphi 0, %s155
    %s172 = sphi 0, %s156
  $region4: #{mscam_forward.1} parent=0 // loop_header_branch
    %14 = sbr.rel (%p12) target = $region8
  $region5: #{mscam_forward.1} parent=0 // loop_body
    %s16 = ssub.s32 %s11, 1
    %s17 = ssub.s32 %s11, 2
    %s24 = sadd.s32 1, %s19
    %p25 = scmp.ge.s32.totalorder %s24, 1
    %s26 = scalar_select %p25, 0, %s24
    %s27 = sadd.s32 1, %s18
    %s28 = scalar_select %p25, %s27, %s18
    %p29 = scmp.ge.s32.totalorder %s28, 2
    %s30 = scalar_select %p29, 0, %s28
    %s31 = ssub.s32 %s18, %s30
    %s32 = ssub.s32 %s19, %s26
    %s33 = sor.u32 %s31, %s32
    %p34 = scmp.eq.s32.totalorder %s33, 0
    %s36 = sadd.s32 %s35, 1
    %s37 = scalar_select %p34, %s35, %s36
    %p40 = pneg %p34
    %p41 = scmp.eq.s32.totalorder %s11, 1
    %p42 = por %p40, %p41
    %p43 = scmp.ne.s32.totalorder %s35, %s38
    %p44 = scmp.eq.s32.totalorder %s11, 0
    %p45 = por %p43, %p44
    %p46 = scmp.ne.s32.totalorder %s35, %s38
    %p47 = scmp.eq.s32.totalorder %s16, 1
    %p48 = por %p46, %p47
    %p49 = scmp.ne.s32.totalorder %s38, %s39
    %p50 = scmp.eq.s32.totalorder %s16, 0
    %p51 = por %p49, %p50
    %p52 = scmp.ne.s32.totalorder %s38, %s39
    %p53 = scmp.eq.s32.totalorder %s17, 1
    %p54 = por %p52, %p53
    %p56 = scmp.ne.s32.totalorder %s39, %s55
    %p57 = scmp.eq.s32.totalorder %s17, 0
    %p58 = por %p56, %p57
    %s60 = sadd.s32 %s59, 1
    %p63 = scmp.eq.s32.totalorder %s11, 1
    %p64 = scmp.ne.s32.totalorder %s59, %s61
    %p65 = scmp.eq.s32.totalorder %s11, 0
    %p66 = por %p64, %p65
    %p67 = scmp.ne.s32.totalorder %s59, %s61
    %p68 = scmp.eq.s32.totalorder %s16, 1
    %p69 = por %p67, %p68
    %p70 = scmp.ne.s32.totalorder %s61, %s62
    %p71 = scmp.eq.s32.totalorder %s16, 0
    %p72 = por %p70, %p71
    %p73 = scmp.ne.s32.totalorder %s61, %s62
    %p74 = scmp.eq.s32.totalorder %s17, 1
    %p75 = por %p73, %p74
    %p77 = scmp.ne.s32.totalorder %s62, %s76
    %p78 = scmp.eq.s32.totalorder %s17, 0
    %p79 = por %p77, %p78
    %s81 = sadd.s32 %s80, 1
    %p84 = scmp.eq.s32.totalorder %s11, 1
    %p85 = scmp.ne.s32.totalorder %s80, %s82
    %p86 = scmp.eq.s32.totalorder %s11, 0
    %p87 = por %p85, %p86
    %p88 = scmp.ne.s32.totalorder %s80, %s82
    %p89 = scmp.eq.s32.totalorder %s16, 1
    %p90 = por %p88, %p89
    %p91 = scmp.ne.s32.totalorder %s82, %s83
    %p92 = scmp.eq.s32.totalorder %s16, 0
    %p93 = por %p91, %p92
    %p94 = scmp.ne.s32.totalorder %s82, %s83
    %p95 = scmp.eq.s32.totalorder %s17, 1
    %p96 = por %p94, %p95
    %p98 = scmp.ne.s32.totalorder %s83, %s97
    %p99 = scmp.eq.s32.totalorder %s17, 0
    %p100 = por %p98, %p99
    %s102 = sadd.s32 %s101, 1
    %p105 = scmp.eq.s32.totalorder %s11, 1
    %p106 = scmp.ne.s32.totalorder %s101, %s103
    %p107 = scmp.eq.s32.totalorder %s11, 0
    %p108 = por %p106, %p107
    %p109 = scmp.ne.s32.totalorder %s101, %s103
    %p110 = scmp.eq.s32.totalorder %s16, 1
    %p111 = por %p109, %p110
    %p112 = scmp.ne.s32.totalorder %s103, %s104
    %p113 = scmp.eq.s32.totalorder %s16, 0
    %p114 = por %p112, %p113
    %p115 = scmp.ne.s32.totalorder %s103, %s104
    %p116 = scmp.eq.s32.totalorder %s17, 1
    %p117 = por %p115, %p116
    %p119 = scmp.ne.s32.totalorder %s104, %s118
    %p120 = scmp.eq.s32.totalorder %s17, 0
    %p121 = por %p119, %p120
    %s122 = ssub.s32 %s18, %s30
    %p123 = scmp.eq.s32.totalorder %s122, 0
    %s125 = sadd.s32 %s124, 1
    %s126 = scalar_select %p123, %s124, %s125
    %p129 = pneg %p123
    %p130 = scmp.eq.s32.totalorder %s11, 1
    %p131 = por %p129, %p130
    %p132 = scmp.ne.s32.totalorder %s124, %s127
    %p133 = scmp.eq.s32.totalorder %s11, 0
    %p134 = por %p132, %p133
    %p135 = scmp.ne.s32.totalorder %s124, %s127
    %p136 = scmp.eq.s32.totalorder %s16, 1
    %p137 = por %p135, %p136
    %p138 = scmp.ne.s32.totalorder %s127, %s128
    %p139 = scmp.eq.s32.totalorder %s16, 0
    %p140 = por %p138, %p139
    %p141 = scmp.ne.s32.totalorder %s127, %s128
    %p142 = scmp.eq.s32.totalorder %s17, 1
    %p143 = por %p141, %p142
    %p145 = scmp.ne.s32.totalorder %s128, %s144
    %p146 = scmp.eq.s32.totalorder %s17, 0
    %p147 = por %p145, %p146
    %s148 = ssub.s32 %s18, %s30
    %s149 = ssub.s32 %s19, %s26
    %s150 = sor.u32 %s148, %s149
    %p151 = scmp.eq.s32.totalorder %s150, 0
    %s153 = sadd.s32 %s152, 1
    %s154 = scalar_select %p151, %s152, %s153
    %p157 = pneg %p151
    %p158 = scmp.eq.s32.totalorder %s11, 1
    %p159 = por %p157, %p158
    %p160 = scmp.ne.s32.totalorder %s152, %s155
    %p161 = scmp.eq.s32.totalorder %s11, 0
    %p162 = por %p160, %p161
    %p163 = scmp.ne.s32.totalorder %s152, %s155
    %p164 = scmp.eq.s32.totalorder %s16, 1
    %p165 = por %p163, %p164
    %p166 = scmp.ne.s32.totalorder %s155, %s156
    %p167 = scmp.eq.s32.totalorder %s16, 0
    %p168 = por %p166, %p167
    %p169 = scmp.ne.s32.totalorder %s155, %s156
    %p170 = scmp.eq.s32.totalorder %s17, 1
    %p171 = por %p169, %p170
    %p173 = scmp.ne.s32.totalorder %s156, %s172
    %p174 = scmp.eq.s32.totalorder %s17, 0
    %p175 = por %p173, %p174
    %p176 = scmp.le.s32.totalorder 1, %s11
    %p177 = scmp.lt.s32.totalorder %s11, 3
    %p178 = pnand %p176, %p177
    %p179 = pneg %p178
    // Predicated region
    $region9: #{mscam_forward.1} parent=5 // pred_check
      _
    $region10: #{mscam_forward.1} parent=5 // pred_check_branch
      %181 = sbr.rel (%p178) target = $region12
    $region11: #{mscam_forward.1} parent=5 // pred_region
      %s182 = ssub.s32 %s11, 1
      // Predicated region
      $region13: #{mscam_forward.1} parent=11 // pred_check
        %p183 = pneg %p72
      $region14: #{mscam_forward.1} parent=11 // pred_check_branch
        %185 = sbr.rel (%p183) target = $region16
      $region15: #{mscam_forward.1} parent=11 // pred_region
        _
      $region16: #{mscam_forward.1} parent=11 // pred_fallthru
        _
      // Predicated region
      $region17: #{mscam_forward.1} parent=11 // pred_check
        %p186 = pneg %p93
      $region18: #{mscam_forward.1} parent=11 // pred_check_branch
        %188 = sbr.rel (%p186) target = $region20
      $region19: #{mscam_forward.1} parent=11 // pred_region
        _
      $region20: #{mscam_forward.1} parent=11 // pred_fallthru
        _
      // Predicated region
      $region21: #{mscam_forward.1} parent=11 // pred_check
        %p189 = pneg %p114
      $region22: #{mscam_forward.1} parent=11 // pred_check_branch
        %191 = sbr.rel (%p189) target = $region24
      $region23: #{mscam_forward.1} parent=11 // pred_region
        _
      $region24: #{mscam_forward.1} parent=11 // pred_fallthru
        _
    $region12: #{mscam_forward.1} parent=5 // pred_fallthru
      _
    %p192 = scmp.lt.s32.totalorder %s11, 2
    // Predicated region
    $region25: #{mscam_forward.1} parent=5 // pred_check
      %p193 = pneg %p192
    $region26: #{mscam_forward.1} parent=5 // pred_check_branch
      %195 = sbr.rel (%p193) target = $region28
    $region27: #{mscam_forward.1} parent=5 // pred_region
      // Predicated region
      $region29: #{mscam_forward.1} parent=27 // pred_check
        %p196 = pneg %p45
      $region30: #{mscam_forward.1} parent=27 // pred_check_branch
        %198 = sbr.rel (%p196) target = $region32
      $region31: #{mscam_forward.1} parent=27 // pred_region
        %s199 = smul.u32 2, %s19
        %p200 = scmp.lt.s32.totalorder %s18, 1
        %s201 = scalar_select %p200, %s18, 1
        %p202 = scmp.lt.s32.totalorder %s199, 1
        %s203 = scalar_select %p202, %s199, 1
        %s204 = smul.addr %s201, 16
        %s205 = sadd.s32 %s203, %s204
        %s206 = smul.addr %s205, 8
        %s207 = scalar_lea.vmem %s0, %s206
        %s208 = smul.u32 2, %s19
      $region32: #{mscam_forward.1} parent=27 // pred_fallthru
        _
      // Predicated region
      $region33: #{mscam_forward.1} parent=27 // pred_check
        %p209 = pneg %p134
      $region34: #{mscam_forward.1} parent=27 // pred_check_branch
        %211 = sbr.rel (%p209) target = $region36
      $region35: #{mscam_forward.1} parent=27 // pred_region
        %p212 = scmp.lt.s32.totalorder %s18, 1
        %s213 = scalar_select %p212, %s18, 1
        %s214 = smul.addr %s213, 8
        %s215 = smul.addr %s214, 8
        %s216 = scalar_lea.vmem %s4, %s215
      $region36: #{mscam_forward.1} parent=27 // pred_fallthru
        _
    $region28: #{mscam_forward.1} parent=5 // pred_fallthru
      _
    %p217 = scmp.le.s32.totalorder 1, %s11
    %p218 = scmp.lt.s32.totalorder %s11, 3
    %p219 = pnand %p217, %p218
    %p220 = pneg %p219
    // Predicated region
    $region37: #{mscam_forward.1} parent=5 // pred_check
      _
    $region38: #{mscam_forward.1} parent=5 // pred_check_branch
      %222 = sbr.rel (%p219) target = $region40
    $region39: #{mscam_forward.1} parent=5 // pred_region
      %s223 = ssub.s32 %s11, 1
      %s224 = smul.u32 2, %s21
      %p225 = scmp.lt.s32.totalorder %s20, 1
      %s226 = scalar_select %p225, %s20, 1
      %p227 = scmp.lt.s32.totalorder %s224, 1
      %s228 = scalar_select %p227, %s224, 1
      %s229 = smul.addr %s226, 16
      %s230 = sadd.s32 %s228, %s229
      %s231 = smul.addr %s230, 8
      %s232 = scalar_lea.vmem %s0, %s231
      %p233 = pneg %p51
      %p234 = pneg %p48
      %p235 = pneg %p72
      %p236 = pneg %p69
      %p237 = pneg %p93
      %p238 = pneg %p90
      %p239 = pneg %p114
      %p240 = pneg %p111
      %p241 = scmp.lt.s32.totalorder %s20, 1
      %s242 = scalar_select %p241, %s20, 1
      %s243 = smul.addr %s242, 8
      %s244 = smul.addr %s243, 8
      %s245 = scalar_lea.vmem %s4, %s244
      %p246 = pneg %p140
      %p247 = pneg %p137
      %p248 = pneg %p168
      %p249 = pneg %p165
      %s250 = smul.u32 2, %s21
      %p251 = scmp.lt.s32.totalorder %s20, 1
      %s252 = scalar_select %p251, %s20, 1
      %p253 = scmp.lt.s32.totalorder %s250, 1
      %s254 = scalar_select %p253, %s250, 1
      %s255 = smul.addr %s252, 16
      %s256 = sadd.s32 %s254, %s255
      %s257 = smul.addr %s256, 8
      %s258 = scalar_lea.vmem %s5, %s257
      %s259 = smul.u32 2, %s21
      %p260 = scmp.lt.s32.totalorder %s20, 1
      %s261 = scalar_select %p260, %s20, 1
      %p262 = scmp.lt.s32.totalorder %s259, 1
      %s263 = scalar_select %p262, %s259, 1
      %s264 = smul.addr %s261, 16
      %s265 = sadd.s32 %s263, %s264
      %s266 = smul.addr %s265, 8
      %s267 = scalar_lea.vmem %s0, %s266
      %s268 = smul.u32 2, %s21
      %p269 = scmp.lt.s32.totalorder %s20, 1
      %s270 = scalar_select %p269, %s20, 1
      %s271 = smul.addr %s270, 8
      %s272 = smul.addr %s271, 8
      %s273 = scalar_lea.vmem %s4, %s272
      %s274 = smul.u32 2, %s21
      %p275 = scmp.lt.s32.totalorder %s20, 1
      %s276 = scalar_select %p275, %s20, 1
      %p277 = scmp.lt.s32.totalorder %s274, 1
      %s278 = scalar_select %p277, %s274, 1
      %s279 = smul.addr %s276, 16
      %s280 = sadd.s32 %s278, %s279
      %s281 = smul.addr %s280, 8
      %s282 = scalar_lea.vmem %s5, %s281
      %s283 = smul.u32 2, %s21
      %v284 = vld [vmem:[%s267] sm:$0xff]
      %v285 = vld [vmem:[%s267 + $0x8] sm:$0xff]
      %v286 = vld [vmem:[%s267 + $0x10] sm:$0xff]
      %v287 = vld [vmem:[%s267 + $0x18] sm:$0xff]
      %v288 = vld [vmem:[%s267 + $0x20] sm:$0xff]
      %v289 = vld [vmem:[%s267 + $0x28] sm:$0xff]
      %v290 = vld [vmem:[%s267 + $0x30] sm:$0xff]
      %v291 = vld [vmem:[%s267 + $0x38] sm:$0xff]
      %v292 = vld [vmem:[%s267 + $0x40] sm:$0xff]
      %v293 = vld [vmem:[%s267 + $0x48] sm:$0xff]
      %v294 = vld [vmem:[%s267 + $0x50] sm:$0xff]
      %v295 = vld [vmem:[%s267 + $0x58] sm:$0xff]
      %v296 = vld [vmem:[%s267 + $0x60] sm:$0xff]
      %v297 = vld [vmem:[%s267 + $0x68] sm:$0xff]
      %v298 = vld [vmem:[%s267 + $0x70] sm:$0xff]
      %v299 = vld [vmem:[%s267 + $0x78] sm:$0xff]
      %v300 = vld [vmem:[%s1] sm:$0xff]
      %v301 = vld [vmem:[%s1 + $0x8] sm:$0xff]
      %v302 = vld [vmem:[%s2] sm:$0xff]
      %v303 = vld [vmem:[%s2 + $0x8] sm:$0xff]
      %305 = vset.pattern.permute.xlu0 0
      %306 = vperm.xlu0 %305, %v302
      %v307 = vpop.permute.xlu0 %306
      %310 = vset.pattern.permute.xlu0 0
      %311 = vperm.xlu0 %310, %v303
      %v312 = vpop.permute.xlu0 %311
      %vm314 = vcmask 523264
      %v316 = vsel %vm314, %v300, 0
      %v319 = vsel %vm314, %v301, 0
      %321 = vmatprep.subr.mxu0 %v285
      %322 = vmatpush1.msra.mxu0 %v284
      %323 = vmatprep.subr.mxu0 %v287
      %324 = vmatpush1.msra.mxu0 %v286
      %325 = vmatprep.subr.mxu0 %v289
      %326 = vmatpush1.msra.mxu0 %v288
      %327 = vmatprep.subr.mxu0 %v291
      %328 = vmatpush1.msra.mxu0 %v290
      %329 = vmatprep.subr.mxu0 %v293
      %330 = vmatpush1.msra.mxu0 %v292
      %331 = vmatprep.subr.mxu0 %v295
      %332 = vmatpush1.msra.mxu0 %v294
      %333 = vmatprep.subr.mxu0 %v297
      %334 = vmatpush1.msra.mxu0 %v296
      %335 = vmatprep.subr.mxu0 %v299
      %336 = vmatpush1.msra.mxu0 %v298
      %337 = vmatprep.subr.mxu0 0.0
      %338 = vmatpush1.msra.mxu0 0.0
      %339 = vmatprep.subr.mxu0 0.0
      %340 = vmatpush1.msra.mxu0 0.0
      %341 = vmatprep.subr.mxu0 0.0
      %342 = vmatpush1.msra.mxu0 0.0
      %343 = vmatprep.subr.mxu0 0.0
      %344 = vmatpush1.msra.mxu0 0.0
      %345 = vmatprep.subr.mxu0 0.0
      %346 = vmatpush1.msra.mxu0 0.0
      %347 = vmatprep.subr.mxu0 0.0
      %348 = vmatpush1.msra.mxu0 0.0
      %349 = vmatprep.subr.mxu0 0.0
      %350 = vmatpush1.msra.mxu0 0.0
      %351 = vmatprep.subr.mxu0 0.0
      %352 = vmatpush1.msra.mxu0 0.0
      %353 = vmatprep.subr.mxu0 0.0
      %354 = vmatpush1.msra.mxu0 0.0
      %355 = vmatprep.subr.mxu0 0.0
      %356 = vmatpush1.msra.mxu0 0.0
      %357 = vmatprep.subr.mxu0 0.0
      %358 = vmatpush1.msra.mxu0 0.0
      %359 = vmatprep.subr.mxu0 0.0
      %360 = vmatpush1.msra.mxu0 0.0
      %361 = vmatprep.subr.mxu0 0.0
      %362 = vmatpush1.msra.mxu0 0.0
      %363 = vmatprep.subr.mxu0 0.0
      %364 = vmatpush1.msra.mxu0 0.0
      %365 = vmatprep.subr.mxu0 0.0
      %366 = vmatpush1.msra.mxu0 0.0
      %367 = vmatprep.subr.mxu0 0.0
      %368 = vmatpush1.msra.mxu0 0.0
      %369 = vmatprep.subr.mxu0 0.0
      %370 = vmatpush1.msra.mxu0 0.0
      %371 = vmatprep.subr.mxu0 0.0
      %372 = vmatpush1.msra.mxu0 0.0
      %373 = vmatprep.subr.mxu0 0.0
      %374 = vmatpush1.msra.mxu0 0.0
      %375 = vmatprep.subr.mxu0 0.0
      %376 = vmatpush1.msra.mxu0 0.0
      %377 = vmatprep.subr.mxu0 0.0
      %378 = vmatpush1.msra.mxu0 0.0
      %379 = vmatprep.subr.mxu0 0.0
      %380 = vmatpush1.msra.mxu0 0.0
      %381 = vmatprep.subr.mxu0 0.0
      %382 = vmatpush1.msra.mxu0 0.0
      %383 = vmatprep.subr.mxu0 0.0
      %384 = vmatpush1.msra.mxu0 0.0
      %385 = vmatprep.mubr.f32.mxu0 0.0
      %386 = vmatmul.mubr.f32.gmra.mrb[0].mxu0 %v316
      %v387 = vpop.f32.mrb[0].mxu0
      %v388 = vadd.f32 %v307, %v387
      %v389 = vpop.f32.mrb[0].mxu0
      %v390 = vadd.f32 %v307, %v389
      %391 = vmatprep.mubr.f32.mxu0 0.0
      %392 = vmatmul.mubr.f32.gmra.mrb[0].mxu0 %v319
      %v393 = vpop.f32.mrb[0].mxu0
      %v394 = vadd.f32 %v312, %v393
      %v395 = vpop.f32.mrb[0].mxu0
      %v396 = vadd.f32 %v312, %v395
      %397 = vdwg.mxu0
      %v398 = vmax.f32 %v388, 0.0
      %v399 = vmax.f32 %v390, 0.0
      %v400 = vmax.f32 %v394, 0.0
      %v401 = vmax.f32 %v396, 0.0
      %v402 = vld [vmem:[%s3] sm:$0xff]
      %v403 = vld [vmem:[%s3 + $0x8] sm:$0xff]
      %v404 = vld [vmem:[%s3 + $0x10] sm:$0xff]
      %v405 = vld [vmem:[%s3 + $0x18] sm:$0xff]
      %v406 = vld [vmem:[%s3 + $0x20] sm:$0xff]
      %v407 = vld [vmem:[%s3 + $0x28] sm:$0xff]
      %v408 = vld [vmem:[%s3 + $0x30] sm:$0xff]
      %v409 = vld [vmem:[%s3 + $0x38] sm:$0xff]
      %v410 = vld [vmem:[%s273] sm:$0xff]
      %v411 = vld [vmem:[%s273 + $0x8] sm:$0xff]
      %v412 = vld [vmem:[%s273 + $0x10] sm:$0xff]
      %v413 = vld [vmem:[%s273 + $0x18] sm:$0xff]
      %v414 = vld [vmem:[%s273 + $0x20] sm:$0xff]
      %v415 = vld [vmem:[%s273 + $0x28] sm:$0xff]
      %v416 = vld [vmem:[%s273 + $0x30] sm:$0xff]
      %v417 = vld [vmem:[%s273 + $0x38] sm:$0xff]
      %419 = vset.pattern.permute.xlu0 0
      %420 = vperm.xlu0 %419, %v410
      %v421 = vpop.permute.xlu0 %420
      %424 = vset.pattern.permute.xlu0 0
      %425 = vperm.xlu0 %424, %v411
      %v426 = vpop.permute.xlu0 %425
      %429 = vset.pattern.permute.xlu0 0
      %430 = vperm.xlu0 %429, %v412
      %v431 = vpop.permute.xlu0 %430
      %434 = vset.pattern.permute.xlu0 0
      %435 = vperm.xlu0 %434, %v413
      %v436 = vpop.permute.xlu0 %435
      %439 = vset.pattern.permute.xlu0 0
      %440 = vperm.xlu0 %439, %v414
      %v441 = vpop.permute.xlu0 %440
      %444 = vset.pattern.permute.xlu0 0
      %445 = vperm.xlu0 %444, %v415
      %v446 = vpop.permute.xlu0 %445
      %449 = vset.pattern.permute.xlu0 0
      %450 = vperm.xlu0 %449, %v416
      %v451 = vpop.permute.xlu0 %450
      %454 = vset.pattern.permute.xlu0 0
      %455 = vperm.xlu0 %454, %v417
      %v456 = vpop.permute.xlu0 %455
      %vm458 = vcmask 130048
      %v460 = vsel %vm458, %v402, 0
      %v463 = vsel %vm458, %v403, 0
      %v466 = vsel %vm458, %v404, 0
      %v469 = vsel %vm458, %v405, 0
      %v472 = vsel %vm458, %v406, 0
      %v475 = vsel %vm458, %v407, 0
      %v478 = vsel %vm458, %v408, 0
      %v481 = vsel %vm458, %v409, 0
      %483 = vmatprep.subr.mxu0 %v399
      %484 = vmatpush1.msra.mxu0 %v398
      %485 = vmatprep.subr.mxu0 %v401
      %486 = vmatpush1.msra.mxu0 %v400
      %487 = vmatprep.subr.mxu0 0.0
      %488 = vmatpush1.msra.mxu0 0.0
      %489 = vmatprep.subr.mxu0 0.0
      %490 = vmatpush1.msra.mxu0 0.0
      %491 = vmatprep.subr.mxu0 0.0
      %492 = vmatpush1.msra.mxu0 0.0
      %493 = vmatprep.subr.mxu0 0.0
      %494 = vmatpush1.msra.mxu0 0.0
      %495 = vmatprep.subr.mxu0 0.0
      %496 = vmatpush1.msra.mxu0 0.0
      %497 = vmatprep.subr.mxu0 0.0
      %498 = vmatpush1.msra.mxu0 0.0
      %499 = vmatprep.subr.mxu0 0.0
      %500 = vmatpush1.msra.mxu0 0.0
      %501 = vmatprep.subr.mxu0 0.0
      %502 = vmatpush1.msra.mxu0 0.0
      %503 = vmatprep.subr.mxu0 0.0
      %504 = vmatpush1.msra.mxu0 0.0
      %505 = vmatprep.subr.mxu0 0.0
      %506 = vmatpush1.msra.mxu0 0.0
      %507 = vmatprep.subr.mxu0 0.0
      %508 = vmatpush1.msra.mxu0 0.0
      %509 = vmatprep.subr.mxu0 0.0
      %510 = vmatpush1.msra.mxu0 0.0
      %511 = vmatprep.subr.mxu0 0.0
      %512 = vmatpush1.msra.mxu0 0.0
      %513 = vmatprep.subr.mxu0 0.0
      %514 = vmatpush1.msra.mxu0 0.0
      %515 = vmatprep.subr.mxu0 0.0
      %516 = vmatpush1.msra.mxu0 0.0
      %517 = vmatprep.subr.mxu0 0.0
      %518 = vmatpush1.msra.mxu0 0.0
      %519 = vmatprep.subr.mxu0 0.0
      %520 = vmatpush1.msra.mxu0 0.0
      %521 = vmatprep.subr.mxu0 0.0
      %522 = vmatpush1.msra.mxu0 0.0
      %523 = vmatprep.subr.mxu0 0.0
      %524 = vmatpush1.msra.mxu0 0.0
      %525 = vmatprep.subr.mxu0 0.0
      %526 = vmatpush1.msra.mxu0 0.0
      %527 = vmatprep.subr.mxu0 0.0
      %528 = vmatpush1.msra.mxu0 0.0
      %529 = vmatprep.subr.mxu0 0.0
      %530 = vmatpush1.msra.mxu0 0.0
      %531 = vmatprep.subr.mxu0 0.0
      %532 = vmatpush1.msra.mxu0 0.0
      %533 = vmatprep.subr.mxu0 0.0
      %534 = vmatpush1.msra.mxu0 0.0
      %535 = vmatprep.subr.mxu0 0.0
      %536 = vmatpush1.msra.mxu0 0.0
      %537 = vmatprep.subr.mxu0 0.0
      %538 = vmatpush1.msra.mxu0 0.0
      %539 = vmatprep.subr.mxu0 0.0
      %540 = vmatpush1.msra.mxu0 0.0
      %541 = vmatprep.subr.mxu0 0.0
      %542 = vmatpush1.msra.mxu0 0.0
      %543 = vmatprep.subr.mxu0 0.0
      %544 = vmatpush1.msra.mxu0 0.0
      %545 = vmatprep.subr.mxu0 0.0
      %546 = vmatpush1.msra.mxu0 0.0
      %547 = vmatprep.mubr.f32.mxu0 0.0
      %548 = vmatmul.mubr.f32.gmra.mrb[0].mxu0 %v460
      %v549 = vpop.f32.mrb[0].mxu0
      %v550 = vadd.f32 %v421, %v549
      %v551 = vpop.f32.mrb[0].mxu0
      %v552 = vadd.f32 %v421, %v551
      %553 = vmatprep.mubr.f32.mxu0 0.0
      %554 = vmatmul.mubr.f32.gmra.mrb[0].mxu0 %v463
      %v555 = vpop.f32.mrb[0].mxu0
      %v556 = vadd.f32 %v426, %v555
      %v557 = vpop.f32.mrb[0].mxu0
      %v558 = vadd.f32 %v426, %v557
      %559 = vmatprep.mubr.f32.mxu0 0.0
      %560 = vmatmul.mubr.f32.gmra.mrb[0].mxu0 %v466
      %v561 = vpop.f32.mrb[0].mxu0
      %v562 = vadd.f32 %v431, %v561
      %v563 = vpop.f32.mrb[0].mxu0
      %v564 = vadd.f32 %v431, %v563
      %565 = vmatprep.mubr.f32.mxu0 0.0
      %566 = vmatmul.mubr.f32.gmra.mrb[0].mxu0 %v469
      %v567 = vpop.f32.mrb[0].mxu0
      %v568 = vadd.f32 %v436, %v567
      %v569 = vpop.f32.mrb[0].mxu0
      %v570 = vadd.f32 %v436, %v569
      %571 = vmatprep.mubr.f32.mxu0 0.0
      %572 = vmatmul.mubr.f32.gmra.mrb[0].mxu0 %v472
      %v573 = vpop.f32.mrb[0].mxu0
      %v574 = vadd.f32 %v441, %v573
      %v575 = vpop.f32.mrb[0].mxu0
      %v576 = vadd.f32 %v441, %v575
      %577 = vmatprep.mubr.f32.mxu0 0.0
      %578 = vmatmul.mubr.f32.gmra.mrb[0].mxu0 %v475
      %v579 = vpop.f32.mrb[0].mxu0
      %v580 = vadd.f32 %v446, %v579
      %v581 = vpop.f32.mrb[0].mxu0
      %v582 = vadd.f32 %v446, %v581
      %583 = vmatprep.mubr.f32.mxu0 0.0
      %584 = vmatmul.mubr.f32.gmra.mrb[0].mxu0 %v478
      %v585 = vpop.f32.mrb[0].mxu0
      %v586 = vadd.f32 %v451, %v585
      %v587 = vpop.f32.mrb[0].mxu0
      %v588 = vadd.f32 %v451, %v587
      %589 = vmatprep.mubr.f32.mxu0 0.0
      %590 = vmatmul.mubr.f32.gmra.mrb[0].mxu0 %v481
      %v591 = vpop.f32.mrb[0].mxu0
      %v592 = vadd.f32 %v456, %v591
      %v593 = vpop.f32.mrb[0].mxu0
      %v594 = vadd.f32 %v456, %v593
      %595 = vdwg.mxu0
      %v596 = vxor.u32 %v550, 2147483648
      %v597 = vxor.u32 %v552, 2147483648
      %v598 = vxor.u32 %v556, 2147483648
      %v599 = vxor.u32 %v558, 2147483648
      %v600 = vxor.u32 %v562, 2147483648
      %v601 = vxor.u32 %v564, 2147483648
      %v602 = vxor.u32 %v568, 2147483648
      %v603 = vxor.u32 %v570, 2147483648
      %v604 = vxor.u32 %v574, 2147483648
      %v605 = vxor.u32 %v576, 2147483648
      %v606 = vxor.u32 %v580, 2147483648
      %v607 = vxor.u32 %v582, 2147483648
      %v608 = vxor.u32 %v586, 2147483648
      %v609 = vxor.u32 %v588, 2147483648
      %v610 = vxor.u32 %v592, 2147483648
      %v611 = vxor.u32 %v594, 2147483648
      %v612 = vmul.f32 %v596, 1.442695
      %v613 = vpow.pop %v612
      %v614 = vmul.f32 %v597, 1.442695
      %v615 = vpow.pop %v614
      %v616 = vmul.f32 %v598, 1.442695
      %v617 = vpow.pop %v616
      %v618 = vmul.f32 %v599, 1.442695
      %v619 = vpow.pop %v618
      %v620 = vmul.f32 %v600, 1.442695
      %v621 = vpow.pop %v620
      %v622 = vmul.f32 %v601, 1.442695
      %v623 = vpow.pop %v622
      %v624 = vmul.f32 %v602, 1.442695
      %v625 = vpow.pop %v624
      %v626 = vmul.f32 %v603, 1.442695
      %v627 = vpow.pop %v626
      %v628 = vmul.f32 %v604, 1.442695
      %v629 = vpow.pop %v628
      %v630 = vmul.f32 %v605, 1.442695
      %v631 = vpow.pop %v630
      %v632 = vmul.f32 %v606, 1.442695
      %v633 = vpow.pop %v632
      %v634 = vmul.f32 %v607, 1.442695
      %v635 = vpow.pop %v634
      %v636 = vmul.f32 %v608, 1.442695
      %v637 = vpow.pop %v636
      %v638 = vmul.f32 %v609, 1.442695
      %v639 = vpow.pop %v638
      %v640 = vmul.f32 %v610, 1.442695
      %v641 = vpow.pop %v640
      %v642 = vmul.f32 %v611, 1.442695
      %v643 = vpow.pop %v642
      %v644 = vadd.f32 %v613, 1.0
      %v645 = vadd.f32 %v615, 1.0
      %v646 = vadd.f32 %v617, 1.0
      %v647 = vadd.f32 %v619, 1.0
      %v648 = vadd.f32 %v621, 1.0
      %v649 = vadd.f32 %v623, 1.0
      %v650 = vadd.f32 %v625, 1.0
      %v651 = vadd.f32 %v627, 1.0
      %v652 = vadd.f32 %v629, 1.0
      %v653 = vadd.f32 %v631, 1.0
      %v654 = vadd.f32 %v633, 1.0
      %v655 = vadd.f32 %v635, 1.0
      %v656 = vadd.f32 %v637, 1.0
      %v657 = vadd.f32 %v639, 1.0
      %v658 = vadd.f32 %v641, 1.0
      %v659 = vadd.f32 %v643, 1.0
      %v660 = vrcp.pop %v644
      %v661 = vmul.f32 1.0, %v660
      %v662 = vrcp.pop %v645
      %v663 = vmul.f32 1.0, %v662
      %v664 = vrcp.pop %v646
      %v665 = vmul.f32 1.0, %v664
      %v666 = vrcp.pop %v647
      %v667 = vmul.f32 1.0, %v666
      %v668 = vrcp.pop %v648
      %v669 = vmul.f32 1.0, %v668
      %v670 = vrcp.pop %v649
      %v671 = vmul.f32 1.0, %v670
      %v672 = vrcp.pop %v650
      %v673 = vmul.f32 1.0, %v672
      %v674 = vrcp.pop %v651
      %v675 = vmul.f32 1.0, %v674
      %v676 = vrcp.pop %v652
      %v677 = vmul.f32 1.0, %v676
      %v678 = vrcp.pop %v653
      %v679 = vmul.f32 1.0, %v678
      %v680 = vrcp.pop %v654
      %v681 = vmul.f32 1.0, %v680
      %v682 = vrcp.pop %v655
      %v683 = vmul.f32 1.0, %v682
      %v684 = vrcp.pop %v656
      %v685 = vmul.f32 1.0, %v684
      %v686 = vrcp.pop %v657
      %v687 = vmul.f32 1.0, %v686
      %v688 = vrcp.pop %v658
      %v689 = vmul.f32 1.0, %v688
      %v690 = vrcp.pop %v659
      %v691 = vmul.f32 1.0, %v690
      %v692 = vmul.f32 %v284, %v661
      %v693 = vmul.f32 %v285, %v663
      %v694 = vmul.f32 %v286, %v665
      %v695 = vmul.f32 %v287, %v667
      %v696 = vmul.f32 %v288, %v669
      %v697 = vmul.f32 %v289, %v671
      %v698 = vmul.f32 %v290, %v673
      %v699 = vmul.f32 %v291, %v675
      %v700 = vmul.f32 %v292, %v677
      %v701 = vmul.f32 %v293, %v679
      %v702 = vmul.f32 %v294, %v681
      %v703 = vmul.f32 %v295, %v683
      %v704 = vmul.f32 %v296, %v685
      %v705 = vmul.f32 %v297, %v687
      %v706 = vmul.f32 %v298, %v689
      %v707 = vmul.f32 %v299, %v691
      %708 = vst [vmem:[%s282] sm:$0xff] %v692
      %709 = vst [vmem:[%s282 + $0x8] sm:$0xff] %v693
      %710 = vst [vmem:[%s282 + $0x10] sm:$0xff] %v694
      %711 = vst [vmem:[%s282 + $0x18] sm:$0xff] %v695
      %712 = vst [vmem:[%s282 + $0x20] sm:$0xff] %v696
      %713 = vst [vmem:[%s282 + $0x28] sm:$0xff] %v697
      %714 = vst [vmem:[%s282 + $0x30] sm:$0xff] %v698
      %715 = vst [vmem:[%s282 + $0x38] sm:$0xff] %v699
      %716 = vst [vmem:[%s282 + $0x40] sm:$0xff] %v700
      %717 = vst [vmem:[%s282 + $0x48] sm:$0xff] %v701
      %718 = vst [vmem:[%s282 + $0x50] sm:$0xff] %v702
      %719 = vst [vmem:[%s282 + $0x58] sm:$0xff] %v703
      %720 = vst [vmem:[%s282 + $0x60] sm:$0xff] %v704
      %721 = vst [vmem:[%s282 + $0x68] sm:$0xff] %v705
      %722 = vst [vmem:[%s282 + $0x70] sm:$0xff] %v706
      %723 = vst [vmem:[%s282 + $0x78] sm:$0xff] %v707
      %s724 = smul.u32 2, %s21
      %p725 = scmp.lt.s32.totalorder %s20, 1
      %s726 = scalar_select %p725, %s20, 1
      %p727 = scmp.lt.s32.totalorder %s724, 1
      %s728 = scalar_select %p727, %s724, 1
      %s729 = smul.addr %s726, 16
      %s730 = sadd.s32 %s728, %s729
      %s731 = smul.addr %s730, 8
      %s732 = scalar_lea.vmem %s5, %s731
      // Predicated region
      $region41: #{mscam_forward.1} parent=39 // pred_check
        %p733 = pneg %p165
      $region42: #{mscam_forward.1} parent=39 // pred_check_branch
        %735 = sbr.rel (%p733) target = $region44
      $region43: #{mscam_forward.1} parent=39 // pred_region
        %s736 = smul.u32 2, %s21
      $region44: #{mscam_forward.1} parent=39 // pred_fallthru
        _
    $region40: #{mscam_forward.1} parent=5 // pred_fallthru
      _
    %p737 = scmp.le.s32.totalorder 2, %s11
    // Predicated region
    $region45: #{mscam_forward.1} parent=5 // pred_check
      %p738 = pneg %p737
    $region46: #{mscam_forward.1} parent=5 // pred_check_branch
      %740 = sbr.rel (%p738) target = $region48
    $region47: #{mscam_forward.1} parent=5 // pred_region
      %s741 = ssub.s32 %s11, 2
      // Predicated region
      $region49: #{mscam_forward.1} parent=47 // pred_check
        %p742 = pneg %p171
      $region50: #{mscam_forward.1} parent=47 // pred_check_branch
        %744 = sbr.rel (%p742) target = $region52
      $region51: #{mscam_forward.1} parent=47 // pred_region
        %s745 = smul.u32 2, %s23
        %p746 = scmp.lt.s32.totalorder %s22, 1
        %s747 = scalar_select %p746, %s22, 1
        %p748 = scmp.lt.s32.totalorder %s745, 1
        %s749 = scalar_select %p748, %s745, 1
        %s750 = smul.addr %s747, 16
        %s751 = sadd.s32 %s749, %s750
        %s752 = smul.addr %s751, 8
        %s753 = scalar_lea.vmem %s5, %s752
      $region52: #{mscam_forward.1} parent=47 // pred_fallthru
        _
    $region48: #{mscam_forward.1} parent=5 // pred_fallthru
      _
  $region6: #{mscam_forward.1} parent=0 // loop_footer
    %s15 = sadd.s32 1, %s11
  $region7: #{mscam_forward.1} parent=0 // loop_footer_branch
    %10 = sbr.rel target = $region3
  $region8: #{mscam_forward.1} parent=0 // loop_exit
    _

</llo_original>
